<compile_context>
chip_gen: v6e
topology: v6e:2x2x1
jax: 0.10.0
libtpu: 0.0.40
codegen_flags: <defaults>
</compile_context>

<pallas_src>
import jax
import jax.numpy as jnp
from jax.experimental import pallas as pl
from jax.experimental.pallas import tpu as pltpu


def _round_up(x, m):
    return ((x + m - 1) // m) * m


def _linear_kernel(x_ref, w_ref, b_ref, o_ref, acc_ref):
    # x_ref : (tm, tk)   VMEM  -- batch tile of x
    # w_ref : (tk, tn)   VMEM  -- tile of W.T (pre-transposed in the wrapper)
    # b_ref : (1, tn)    VMEM  -- bias row tile, broadcasts over the batch tile
    # o_ref : (tm, tn)   VMEM  -- output tile (written on the last K step)
    # acc_ref: (tm, tn)  VMEM  -- f32 accumulator, persists across the K axis
    k = pl.program_id(2)

    @pl.when(k == 0)
    def _():
        acc_ref[...] = jnp.zeros_like(acc_ref)

    acc_ref[...] += jnp.dot(
        x_ref[...], w_ref[...], preferred_element_type=jnp.float32
    )

    @pl.when(k == pl.num_programs(2) - 1)
    def _():
        o_ref[...] = (acc_ref[...] + b_ref[...]).astype(o_ref.dtype)


def reward_function_forward(x, weight, bias, *, max_tm=512, use_bf16=False):
    """y = x @ weight.T + bias, matching torch.nn.Linear.forward.

    x:      (B, input_size)            float32
    weight: (output_size, input_size)  float32
    bias:   (output_size,)             float32
    """
    B, K = x.shape
    N = weight.shape[0]
    assert weight.shape == (N, K)
    assert bias.shape == (N,)

    # ---- Contraction dim: must be fully covered by the K grid (garbage in a
    # padded reduction block is unsafe), and lane-dense (multiple of 128) for
    # efficient row DMAs. Zero padding is exact (0 * w == 0).
    k_pad = K if K % 128 == 0 else _round_up(K, 128)

    # ---- Tile sizes.
    tm = min(max_tm, _round_up(B, 8))          # batch tile (8-aligned)
    if k_pad <= 512:
        tk = k_pad
    elif k_pad % 512 == 0:
        tk = 512
    elif k_pad % 256 == 0:
        tk = 256
    else:
        tk = 128                               # k_pad is a multiple of 128
    if N >= 256:
        tn = 256                               # full MXU width on v6e/v7x
    elif N >= 128:
        tn = 128
    else:
        tn = N                                 # full-dim block; masked stores
                                               # beat an extra output copy here

    # ---- One-time wrapper prep: transpose weight to (K, N) so the kernel body
    # is a plain MXU matmul every step; pad K only if misaligned.
    w_t = weight.T
    if k_pad != K:
        x = jnp.pad(x, ((0, 0), (0, k_pad - K)))
        w_t = jnp.pad(w_t, ((0, k_pad - K), (0, 0)))
    b2 = bias.reshape(1, N)

    if use_bf16:
        # Optional throughput lever (HBM-bound at real sizes); accumulation and
        # bias stay f32. Off by default to preserve exact nn.Linear numerics.
        x = x.astype(jnp.bfloat16)
        w_t = w_t.astype(jnp.bfloat16)

    grid = (pl.cdiv(B, tm), pl.cdiv(N, tn), k_pad // tk)

    itemsize = 2 if use_bf16 else 4
    cost = pl.CostEstimate(
        flops=2 * B * k_pad * N,
        transcendentals=0,
        bytes_accessed=itemsize * (B * k_pad + k_pad * N) + 4 * (N + B * N),
    )

    # Explicit VMEM budget: double-buffered x/w/bias/out tiles + f32 accumulator,
    # with headroom; capped well under v7x's 64 MiB/TC physical VMEM.
    vmem_need = (
        2 * tm * tk * itemsize      # x (double-buffered)
        + 2 * tk * tn * itemsize    # W.T
        + 2 * tn * 4                # bias row
        + 2 * tm * tn * 4           # output
        + tm * tn * 4               # accumulator scratch
    )
    vmem_limit = int(min(max(4 * vmem_need, 32 * 1024 * 1024), 48 * 1024 * 1024))

    out = pl.pallas_call(
        _linear_kernel,
        out_shape=jax.ShapeDtypeStruct((B, N), jnp.float32),
        grid=grid,
        in_specs=[
            pl.BlockSpec((tm, tk), lambda i, j, k: (i, k)),   # x tile
            pl.BlockSpec((tk, tn), lambda i, j, k: (k, j)),   # W.T tile
            pl.BlockSpec((1, tn), lambda i, j, k: (0, j)),    # bias tile
        ],
        out_specs=pl.BlockSpec((tm, tn), lambda i, j, k: (i, j)),
        scratch_shapes=[pltpu.VMEM((tm, tn), jnp.float32)],
        compiler_params=pltpu.CompilerParams(
            dimension_semantics=("parallel", "parallel", "arbitrary"),
            vmem_limit_bytes=vmem_limit,
        ),
        cost_estimate=cost,
    )(x, w_t, b2)

    return out


if __name__ == "__main__":
    # Small shapes consistent with the module: batch=8, input_size=32, output_size=16.
    B, input_size, output_size = 8, 32, 16

    key = jax.random.PRNGKey(0)
    kx, kw, kb = jax.random.split(key, 3)

    x = jax.random.normal(kx, (B, input_size), dtype=jnp.float32)
    # Deterministic parameter init (Linear-like scale).
    bound = 1.0 / jnp.sqrt(jnp.float32(input_size))
    weight = jax.random.uniform(
        kw, (output_size, input_size), dtype=jnp.float32, minval=-bound, maxval=bound
    )
    bias = jax.random.uniform(
        kb, (output_size,), dtype=jnp.float32, minval=-bound, maxval=bound
    )

    y = reward_function_forward(x, weight, bias)
    jax.block_until_ready(y)

    # Pure-JAX reference check.
    y_ref = x @ weight.T + bias
    assert y.shape == (B, output_size)
    assert jnp.allclose(y, y_ref, atol=1e-5, rtol=1e-5)

    print("KERNEL_OK")
</pallas_src>

<mosaic_0001>
module attributes {stable_mosaic.version = 11 : i64} {
  func.func @_linear_kernel(%arg0: i32, %arg1: i32, %arg2: i32, %arg3: memref<8x128xf32, #tpu.memory_space<vmem>>, %arg4: memref<128x16xf32, #tpu.memory_space<vmem>>, %arg5: memref<1x16xf32, #tpu.memory_space<vmem>>, %arg6: memref<8x16xf32, #tpu.memory_space<vmem>>, %arg7: memref<8x16xf32, #tpu.memory_space<vmem>>) attributes {dimension_semantics = [#tpu.dimension_semantics<parallel>, #tpu.dimension_semantics<parallel>, #tpu.dimension_semantics<arbitrary>], iteration_bounds = array<i64: 1, 1, 1>, scalar_prefetch = 0 : i64, scratch_operands = 1 : i64, tpu.core_type = #tpu.core_type<tc>, window_params = [{transform_indices = @transform_0, window_bounds = array<i64: 8, 128>}, {transform_indices = @transform_1, window_bounds = array<i64: 128, 16>}, {transform_indices = @transform_2, window_bounds = array<i64: 1, 16>}, {transform_indices = @transform_3, window_bounds = array<i64: 8, 16>}]} {
    %c0_i32 = arith.constant 0 : i32
    %0 = arith.cmpi eq, %arg2, %c0_i32 : i32
    %1 = arith.extui %0 : i1 to i32
    %c0_i32_0 = arith.constant 0 : i32
    %2 = arith.cmpi ne, %1, %c0_i32_0 : i32
    scf.if %2 {
      %cst_10 = arith.constant 0.000000e+00 : f32
      %12 = vector.broadcast %cst_10 : f32 to vector<8x16xf32>
      %c0_11 = arith.constant 0 : index
      %c0_12 = arith.constant 0 : index
      %13 = vector.load %arg7[%c0_11, %c0_12] : memref<8x16xf32, #tpu.memory_space<vmem>>, vector<8x16xf32>
      tpu.vector_store %arg7[%c0_11, %c0_12], %12 {strides = array<i32>} : memref<8x16xf32, #tpu.memory_space<vmem>>, vector<8x16xf32>,
    } else {
    }
    %c0 = arith.constant 0 : index
    %c0_1 = arith.constant 0 : index
    %3 = vector.load %arg7[%c0, %c0_1] : memref<8x16xf32, #tpu.memory_space<vmem>>, vector<8x16xf32>
    %c0_2 = arith.constant 0 : index
    %c0_3 = arith.constant 0 : index
    %4 = vector.load %arg3[%c0_2, %c0_3] : memref<8x128xf32, #tpu.memory_space<vmem>>, vector<8x128xf32>
    %c0_4 = arith.constant 0 : index
    %c0_5 = arith.constant 0 : index
    %5 = vector.load %arg4[%c0_4, %c0_5] : memref<128x16xf32, #tpu.memory_space<vmem>>, vector<128x16xf32>
    %cst = arith.constant dense<0.000000e+00> : vector<8x16xf32>
    %6 = tpu.matmul %4, %5, %cst {dimension_numbers = #tpu.dot_dimension_numbers<[1], [0], [0], [1], [0, 0, 1, 1], [], []>} : vector<8x128xf32>, vector<128x16xf32>, vector<8x16xf32> -> vector<8x16xf32>
    %7 = arith.addf %3, %6 : vector<8x16xf32>
    %c0_6 = arith.constant 0 : index
    %c0_7 = arith.constant 0 : index
    %8 = vector.load %arg7[%c0_6, %c0_7] : memref<8x16xf32, #tpu.memory_space<vmem>>, vector<8x16xf32>
    tpu.vector_store %arg7[%c0_6, %c0_7], %7 {strides = array<i32>} : memref<8x16xf32, #tpu.memory_space<vmem>>, vector<8x16xf32>,
    %c0_i32_8 = arith.constant 0 : i32
    %9 = arith.cmpi eq, %arg2, %c0_i32_8 : i32
    %10 = arith.extui %9 : i1 to i32
    %c0_i32_9 = arith.constant 0 : i32
    %11 = arith.cmpi ne, %10, %c0_i32_9 : i32
    scf.if %11 {
      %c0_10 = arith.constant 0 : index
      %c0_11 = arith.constant 0 : index
      %12 = vector.load %arg7[%c0_10, %c0_11] : memref<8x16xf32, #tpu.memory_space<vmem>>, vector<8x16xf32>
      %c0_12 = arith.constant 0 : index
      %c0_13 = arith.constant 0 : index
      %13 = vector.load %arg5[%c0_12, %c0_13] : memref<1x16xf32, #tpu.memory_space<vmem>>, vector<1x16xf32>
      %14 = vector.broadcast %13 : vector<1x16xf32> to vector<8x16xf32>
      %15 = arith.addf %12, %14 : vector<8x16xf32>
      %c0_14 = arith.constant 0 : index
      %c0_15 = arith.constant 0 : index
      %16 = vector.load %arg6[%c0_14, %c0_15] : memref<8x16xf32, #tpu.memory_space<vmem>>, vector<8x16xf32>
      tpu.vector_store %arg6[%c0_14, %c0_15], %15 {strides = array<i32>} : memref<8x16xf32, #tpu.memory_space<vmem>>, vector<8x16xf32>,
    } else {
    }
    return
  }
  func.func @transform_0(%arg0: i32, %arg1: i32, %arg2: i32) -> (i32, i32) {
    %c0_i32 = arith.constant 0 : i32
    return %arg0, %arg2 : i32, i32
  }
  func.func @transform_1(%arg0: i32, %arg1: i32, %arg2: i32) -> (i32, i32) {
    %c0_i32 = arith.constant 0 : i32
    return %arg2, %arg1 : i32, i32
  }
  func.func @transform_2(%arg0: i32, %arg1: i32, %arg2: i32) -> (i32, i32) {
    %c0_i32 = arith.constant 0 : i32
    %c0_i32_0 = arith.constant 0 : i32
    return %c0_i32, %arg1 : i32, i32
  }
  func.func @transform_3(%arg0: i32, %arg1: i32, %arg2: i32) -> (i32, i32) {
    %c0_i32 = arith.constant 0 : i32
    return %arg0, %arg1 : i32, i32
  }
}

</mosaic_0001>

<llo_original>
// kernel: tpu_custom_call.1
$region0: #{tpu_custom_call.1}
  #allocation0 [shape = 'u32[]', space=smem, size = 0x4, offset = 0x4, fixed_abs, tag = 'smem constant byte address 0x4 - core index']
  #allocation1 [shape = 'u32[144,128]{1,0:T(1,128)}', space=vmem, size = 0x12000, scoped, tag = 'internal scratch']
  #allocation2 [shape = 'f32[8,16]{1,0:T(8,128)}', space=vmem, size = 0x1000, scoped, tag = 'scratch operand']
  %s0 = inlined_call_operand.vmem [shape: f32[8,128], index: 0, kind: input, shape index: {}]
  %s1 = inlined_call_operand.vmem [shape: f32[128,16], index: 1, kind: input, shape index: {}]
  %s2 = inlined_call_operand.vmem [shape: f32[1,16], index: 2, kind: input, shape index: {}]
  %s3 = inlined_call_operand.hbm [shape: f32[8,16], index: 3, kind: output, shape index: {}]
  %s4 = sld [smem:[#allocation0]]
  $region30: #{tpu_custom_call.1} parent=0
    _
  %s6 = ssub.s32 1, %s4
  %s7 = scalar_select 0, %s6, %s4
  $region1: #{tpu_custom_call.1} parent=0
    #allocation3 [shape = 'u8[4096]{0}', space=vmem, size = 0x1000, scoped, tag = 'output window, operand 0, single buffered']
    #allocation4 [shape = 's32[1]{0}', space=sflag, size = 0x4, scoped, tag = 'scoped memory for tpu_custom_call.1']
    %8 = vsyncpa [#allocation4], 0
    // Predicated region
    $region2: #{tpu_custom_call.1} parent=1 // pred_check
      _
    $region3: #{tpu_custom_call.1} parent=1 // pred_check_branch
      %10 = sbr.rel (0) target = $region5
    $region4: #{tpu_custom_call.1} parent=1 // pred_region
      _
    $region5: #{tpu_custom_call.1} parent=1 // pred_fallthru
      _
    // Predicated region
    $region6: #{tpu_custom_call.1} parent=1 // pred_check
      _
    $region7: #{tpu_custom_call.1} parent=1 // pred_check_branch
      %12 = sbr.rel (0) target = $region9
    $region8: #{tpu_custom_call.1} parent=1 // pred_region
      _
    $region9: #{tpu_custom_call.1} parent=1 // pred_fallthru
      _
    // Predicated region
    $region10: #{tpu_custom_call.1} parent=1 // pred_check
      _
    $region11: #{tpu_custom_call.1} parent=1 // pred_check_branch
      %14 = sbr.rel (0) target = $region13
    $region12: #{tpu_custom_call.1} parent=1 // pred_region
      _
    $region13: #{tpu_custom_call.1} parent=1 // pred_fallthru
      _
    %p15 = scmp.eq.s32.totalorder 0, 0
    // Predicated region
    $region14: #{tpu_custom_call.1} parent=1 // pred_check
      %p16 = pneg %p15
    $region15: #{tpu_custom_call.1} parent=1 // pred_check_branch
      %18 = sbr.rel (%p16) target = $region17
    $region16: #{tpu_custom_call.1} parent=1 // pred_region
      %vm19 = vcmask 130048
      %20 = vst.msk [vmem:[#allocation2] sm:$0xff] %vm19, 0.0
    $region17: #{tpu_custom_call.1} parent=1 // pred_fallthru
      _
    %v21 = vld [vmem:[#allocation2] sm:$0xff]
    %v22 = vld [vmem:[%s0] sm:$0xff]
    %v23 = vld [vmem:[%s1] sm:$0xff]
    %v24 = vld [vmem:[%s1 + $0x8] sm:$0xff]
    %v25 = vld [vmem:[%s1 + $0x10] sm:$0xff]
    %v26 = vld [vmem:[%s1 + $0x18] sm:$0xff]
    %v27 = vld [vmem:[%s1 + $0x20] sm:$0xff]
    %v28 = vld [vmem:[%s1 + $0x28] sm:$0xff]
    %v29 = vld [vmem:[%s1 + $0x30] sm:$0xff]
    %v30 = vld [vmem:[%s1 + $0x38] sm:$0xff]
    %v31 = vld [vmem:[%s1 + $0x40] sm:$0xff]
    %v32 = vld [vmem:[%s1 + $0x48] sm:$0xff]
    %v33 = vld [vmem:[%s1 + $0x50] sm:$0xff]
    %v34 = vld [vmem:[%s1 + $0x58] sm:$0xff]
    %v35 = vld [vmem:[%s1 + $0x60] sm:$0xff]
    %v36 = vld [vmem:[%s1 + $0x68] sm:$0xff]
    %v37 = vld [vmem:[%s1 + $0x70] sm:$0xff]
    %v38 = vld [vmem:[%s1 + $0x78] sm:$0xff]
    %39 = vmatprep.subr.mxu0 0.0
    %40 = vmatpush1.msra.mxu0 %v38
    %41 = vmatprep.subr.mxu0 0.0
    %42 = vmatpush1.msra.mxu0 %v37
    %43 = vmatprep.subr.mxu0 0.0
    %44 = vmatpush1.msra.mxu0 %v36
    %45 = vmatprep.subr.mxu0 0.0
    %46 = vmatpush1.msra.mxu0 %v35
    %47 = vmatprep.subr.mxu0 0.0
    %48 = vmatpush1.msra.mxu0 %v34
    %49 = vmatprep.subr.mxu0 0.0
    %50 = vmatpush1.msra.mxu0 %v33
    %51 = vmatprep.subr.mxu0 0.0
    %52 = vmatpush1.msra.mxu0 %v32
    %53 = vmatprep.subr.mxu0 0.0
    %54 = vmatpush1.msra.mxu0 %v31
    %55 = vmatprep.subr.mxu0 0.0
    %56 = vmatpush1.msra.mxu0 %v30
    %57 = vmatprep.subr.mxu0 0.0
    %58 = vmatpush1.msra.mxu0 %v29
    %59 = vmatprep.subr.mxu0 0.0
    %60 = vmatpush1.msra.mxu0 %v28
    %61 = vmatprep.subr.mxu0 0.0
    %62 = vmatpush1.msra.mxu0 %v27
    %63 = vmatprep.subr.mxu0 0.0
    %64 = vmatpush1.msra.mxu0 %v26
    %65 = vmatprep.subr.mxu0 0.0
    %66 = vmatpush1.msra.mxu0 %v25
    %67 = vmatprep.subr.mxu0 0.0
    %68 = vmatpush1.msra.mxu0 %v24
    %69 = vmatprep.subr.mxu0 0.0
    %70 = vmatpush1.msra.mxu0 %v23
    %71 = vmatprep.subr.mxu0 0.0
    %72 = vmatpush2.msra.mxu0 0.0
    %73 = vmatprep.subr.mxu0 0.0
    %74 = vmatpush2.msra.mxu0 0.0
    %75 = vmatprep.subr.mxu0 0.0
    %76 = vmatpush2.msra.mxu0 0.0
    %77 = vmatprep.subr.mxu0 0.0
    %78 = vmatpush2.msra.mxu0 0.0
    %79 = vmatprep.subr.mxu0 0.0
    %80 = vmatpush2.msra.mxu0 0.0
    %81 = vmatprep.subr.mxu0 0.0
    %82 = vmatpush2.msra.mxu0 0.0
    %83 = vmatprep.subr.mxu0 0.0
    %84 = vmatpush2.msra.mxu0 0.0
    %85 = vmatprep.subr.mxu0 0.0
    %86 = vmatpush2.msra.mxu0 0.0
    %87 = vmatprep.subr.mxu0 0.0
    %88 = vmatpush2.msra.mxu0 0.0
    %89 = vmatprep.subr.mxu0 0.0
    %90 = vmatpush2.msra.mxu0 0.0
    %91 = vmatprep.subr.mxu0 0.0
    %92 = vmatpush2.msra.mxu0 0.0
    %93 = vmatprep.subr.mxu0 0.0
    %94 = vmatpush2.msra.mxu0 0.0
    %95 = vmatprep.subr.mxu0 0.0
    %96 = vmatpush2.msra.mxu0 0.0
    %97 = vmatprep.subr.mxu0 0.0
    %98 = vmatpush2.msra.mxu0 0.0
    %99 = vmatprep.subr.mxu0 0.0
    %100 = vmatpush2.msra.mxu0 0.0
    %101 = vmatprep.subr.mxu0 0.0
    %102 = vmatpush2.msra.mxu0 0.0
    %103 = vmatprep.mubr.f32.mxu0 0.0
    %104 = vmatmul.mubr.f32.gmra.mxu0 %v22
    %v105 = vpop.f32.mrf.mxu0
    %v106 = vadd.f32 0.0, %v105
    %v107 = vpop.f32.mrf.mxu0
    %108 = vdwg.mxu0
    %v109 = vadd.f32 %v21, %v106
    %vm110 = vcmask 130048
    %111 = vst.msk [vmem:[#allocation2] sm:$0xff] %vm110, %v109
    // Predicated region
    $region18: #{tpu_custom_call.1} parent=1 // pred_check
      %p112 = pneg %p15
    $region19: #{tpu_custom_call.1} parent=1 // pred_check_branch
      %114 = sbr.rel (%p112) target = $region21
    $region20: #{tpu_custom_call.1} parent=1 // pred_region
      %v115 = vld [vmem:[#allocation2] sm:$0xff]
      %v116 = vld [vmem:[%s2] sm:$0x1]
      %v118 = vlaneseq
      %v119 = vshrl.u32 %v118, 7
      %v120 = vsub.s32 0, %v119
      %v121 = vrot.slane %v116, %v120
      %v123 = vadd.f32 %v115, %v121
      %124 = vst.msk [vmem:[#allocation3] sm:$0xff] %vm110, %v123
    $region21: #{tpu_custom_call.1} parent=1 // pred_fallthru
      _
    // Predicated region
    $region22: #{tpu_custom_call.1} parent=1 // pred_check
      _
    $region23: #{tpu_custom_call.1} parent=1 // pred_check_branch
      %126 = sbr.rel (0) target = $region25
    $region24: #{tpu_custom_call.1} parent=1 // pred_region
      %s128 = ssub.s32 128, 128
      %129 = vsyncadd [#allocation4], %s128
      %s131 = sshll.u32 [#allocation3], 4
      %s132 = int_to_ptr.vmem [resolvable:$true] %s131
      %134 = dma.vmem_to_hbm [thread:$0]  %s132, 128, %s3, [#allocation4]
    $region25: #{tpu_custom_call.1} parent=1 // pred_fallthru
      _
    // Predicated region
    $region26: #{tpu_custom_call.1} parent=1 // pred_check
      _
    $region27: #{tpu_custom_call.1} parent=1 // pred_check_branch
      %136 = sbr.rel (0) target = $region29
    $region28: #{tpu_custom_call.1} parent=1 // pred_region
      %137 = dma.done [#allocation4], 128
    $region29: #{tpu_custom_call.1} parent=1 // pred_fallthru
      _
    %138 = vsyncpa [#allocation4], 1

</llo_original>
